<compile_context>
chip_gen: v6e
topology: v6e:2x2x1
jax: 0.10.0
libtpu: 0.0.40
codegen_flags: <defaults>
</compile_context>

<pallas_src>
import functools

import jax
import jax.numpy as jnp
from jax.experimental import pallas as pl
from jax.experimental.pallas import tpu as pltpu


def _token_embedding_kernel(x_ref, w_ref, b_ref, o_ref):
    """One (M-tile, D-tile) grid step: (bm, K_pad) @ (K_pad, bd) + bias -> (bm, bd)."""
    acc = jnp.dot(x_ref[...], w_ref[...], preferred_element_type=jnp.float32)
    acc = acc + b_ref[...]            # (1, bd) f32 broadcasts over rows (VPU filler)
    o_ref[...] = acc.astype(o_ref.dtype)


def pack_token_embedding_params(weight, bias, compute_dtype=None):
    """One-time parameter packing (call at param-prep time, not per forward).

    weight: (D, C_in, 3)  PyTorch Conv1d layout
    bias  : (D,)
    compute_dtype: optionally pack weights in bf16 (MXU runs bf16, accumulation
      stays f32 inside the kernel; outputs deviate slightly from the f32 reference).
    Returns:
      w_packed: (K_pad, D) with K_pad = round_up(3*C_in, 8),
                rows [k*C_in + c] = weight[:, c, k]; zero rows for padding.
      b2d     : (1, D) float32
    """
    D, C_in, ksize = weight.shape
    assert ksize == 3, "TokenEmbedding uses kernel_size=3"
    K = 3 * C_in
    K_pad = ((K + 7) // 8) * 8
    w = jnp.transpose(weight, (2, 1, 0)).reshape(K, D)   # [k*C_in + c, d] = weight[d, c, k]
    if compute_dtype is not None:
        w = w.astype(compute_dtype)
    if K_pad > K:
        w = jnp.concatenate([w, jnp.zeros((K_pad - K, D), w.dtype)], axis=0)
    b2d = bias.reshape(1, D).astype(jnp.float32)
    return w, b2d


def _round_up(x, m):
    return -(-x // m) * m


def _vmem_need_bytes(bm, k_pad, bd, in_itemsize, out_itemsize):
    """Honest VMEM estimate: lane padding + double-buffering counted once (no 2x fudge)."""
    k_lanes = _round_up(k_pad, 128)     # (bm, K_pad) tile is laid out lane-padded to 128
    d_lanes = _round_up(bd, 128)
    need = (
        2 * bm * k_lanes * in_itemsize        # x tile, double buffered, lane padded
        + 2 * k_pad * d_lanes * in_itemsize   # weight tile, double buffered
        + 2 * 8 * d_lanes * 4                 # bias (1, bd) sublane-padded to 8, f32, x2
        + 2 * bm * d_lanes * out_itemsize     # output tile, double buffered
        + bm * d_lanes * 4                    # f32 matmul/accumulate intermediate
    )
    return int(need)


@functools.lru_cache(maxsize=1)
def _vmem_cap_bytes():
    """~75% of physical VMEM for this generation (64 MiB v7x, 128 MiB v5e/v6e)."""
    try:
        info = pltpu.get_tpu_info()
        cap = getattr(info, "vmem_capacity_bytes", None)
        if cap:
            return int(cap) * 3 // 4
    except Exception:
        pass
    return 48 << 20   # conservative fallback: 75% of v7x's 64 MiB


def token_embedding(x, w_packed, b2d, *, block_m=1024, block_d=None, out_dtype=None):
    """x: (B, L, C_in);  w_packed/b2d from pack_token_embedding_params.

    Returns (B, L, D) == TokenEmbedding(c_in, d_model).forward(x) in PyTorch.
    Pass out_dtype=jnp.bfloat16 when the consumer tolerates it (halves the dominant
    HBM output stream; accumulation inside the kernel stays f32 regardless).
    """
    B, L, C_in = x.shape
    K = 3 * C_in
    K_pad, D = w_packed.shape
    out_dtype = out_dtype or x.dtype
    M = B * L

    # im2col with circular wrap, in the compute dtype: tap k uses x[(t + k - 1) mod L].
    # roll(+1)[t] = x[t-1], roll(-1)[t] = x[t+1]; wrap stays within each batch
    # because we roll before flattening (B, L) -> M.
    xw = x.astype(w_packed.dtype)
    x_prev = jnp.roll(xw, 1, axis=1)
    x_next = jnp.roll(xw, -1, axis=1)
    parts = [x_prev, xw, x_next]
    if K_pad > K:
        parts.append(jnp.zeros((B, L, K_pad - K), w_packed.dtype))
    xc = jnp.concatenate(parts, axis=-1).reshape(M, K_pad)

    # --- M tiling: big row blocks (multiple of 8); keep >= 4 grid steps when M allows
    # (2 TensorCores on v7x x double-buffering), ragged tail handled by Pallas masking.
    bm_target = min(block_m, M)
    if M >= 4 * 512:
        bm_target = min(bm_target, M // 4)
    bm = max(8, (bm_target // 8) * 8)
    num_m = pl.cdiv(M, bm)

    in_is = jnp.dtype(xc.dtype).itemsize
    out_is = jnp.dtype(out_dtype).itemsize
    cap = _vmem_cap_bytes()
    slack = 4 << 20   # compiler scratch / pipeline bookkeeping

    # --- D tiling: full D by default (lane-dense stores); auto-shrink in 128-multiples
    # only when the VMEM estimate would exceed the generation cap (e.g. v7x, huge D).
    if block_d is not None:
        assert D % block_d == 0 and (block_d % 128 == 0 or block_d == D)
        bd = block_d
    else:
        bd = D
        while (bd % 256 == 0 and bd > 128
               and _vmem_need_bytes(bm, K_pad, bd, in_is, out_is) + slack > cap):
            bd //= 2
    num_d = D // bd

    need = _vmem_need_bytes(bm, K_pad, bd, in_is, out_is)
    vmem_limit = int(min(max(need + slack, 32 << 20), cap))

    out = pl.pallas_call(
        _token_embedding_kernel,
        out_shape=jax.ShapeDtypeStruct((M, D), out_dtype),
        grid_spec=pltpu.PrefetchScalarGridSpec(
            num_scalar_prefetch=0,
            grid=(num_m, num_d),
            in_specs=[
                pl.BlockSpec((bm, K_pad), lambda m, d: (m, 0)),   # x tile
                pl.BlockSpec((K_pad, bd), lambda m, d: (0, d)),   # packed weight
                pl.BlockSpec((1, bd), lambda m, d: (0, d)),       # bias (f32)
            ],
            out_specs=pl.BlockSpec((bm, bd), lambda m, d: (m, d)),
        ),
        compiler_params=pltpu.CompilerParams(
            dimension_semantics=("parallel", "parallel"),
            vmem_limit_bytes=vmem_limit,
        ),
    )(xc, w_packed, b2d)

    return out.reshape(B, L, D)


def token_embedding_reference(x, weight, bias):
    """Plain-JAX reference mirroring the PyTorch module (for verification)."""
    B, L, C_in = x.shape
    D = weight.shape[0]
    x_pad = jnp.concatenate([x[:, -1:, :], x, x[:, :1, :]], axis=1)  # (B, L+2, C_in)
    out = jnp.zeros((B, L, D), dtype=jnp.float32)
    for k in range(3):
        out = out + jnp.einsum("blc,cd->bld", x_pad[:, k:k + L, :], weight[:, :, k].T)
    return out + bias[None, None, :]


if __name__ == "__main__":
    root = jax.random.PRNGKey(0)

    # --- Small shape consistent with the module's forward (correctness smoke test) ---
    B, L, c_in, d_model = 2, 8, 4, 32
    kx, kw, kb, k2 = jax.random.split(root, 4)
    weight = jax.random.normal(kw, (d_model, c_in, 3), dtype=jnp.float32) * 0.1
    bias = jax.random.normal(kb, (d_model,), dtype=jnp.float32) * 0.1
    x = jax.random.normal(kx, (B, L, c_in), dtype=jnp.float32)

    w_packed, b2d = pack_token_embedding_params(weight, bias)   # one-time packing
    out = jax.block_until_ready(token_embedding(x, w_packed, b2d))
    ref = token_embedding_reference(x, weight, bias)
    assert out.shape == (B, L, d_model), out.shape
    err = float(jnp.max(jnp.abs(out - ref)))
    assert jnp.allclose(out, ref, atol=1e-3, rtol=1e-3), err

    # --- Medium shape: multi-step grid, ragged last M block, lane-dense (128x) D ---
    B2, L2, c2, d2 = 2, 200, 7, 256
    k2x, k2w, k2b = jax.random.split(k2, 3)
    weight2 = jax.random.normal(k2w, (d2, c2, 3), dtype=jnp.float32) * 0.1
    bias2 = jax.random.normal(k2b, (d2,), dtype=jnp.float32) * 0.1
    x2 = jax.random.normal(k2x, (B2, L2, c2), dtype=jnp.float32)

    w2_packed, b2_2d = pack_token_embedding_params(weight2, bias2)
    out2 = jax.block_until_ready(token_embedding(x2, w2_packed, b2_2d, block_m=128))
    ref2 = token_embedding_reference(x2, weight2, bias2)
    assert out2.shape == (B2, L2, d2), out2.shape
    err2 = float(jnp.max(jnp.abs(out2 - ref2)))
    assert jnp.allclose(out2, ref2, atol=1e-3, rtol=1e-3), err2

    print("KERNEL_OK")
</pallas_src>

<mosaic_0001>
module attributes {stable_mosaic.version = 11 : i64} {
  func.func @_token_embedding_kernel(%arg0: i32, %arg1: i32, %arg2: memref<16x16xf32, #tpu.memory_space<vmem>>, %arg3: memref<16x32xf32, #tpu.memory_space<vmem>>, %arg4: memref<1x32xf32, #tpu.memory_space<vmem>>, %arg5: memref<16x32xf32, #tpu.memory_space<vmem>>) attributes {dimension_semantics = [#tpu.dimension_semantics<parallel>, #tpu.dimension_semantics<parallel>], iteration_bounds = array<i64: 1, 1>, scalar_prefetch = 0 : i64, scratch_operands = 0 : i64, tpu.core_type = #tpu.core_type<tc>, window_params = [{transform_indices = @transform_0, window_bounds = array<i64: 16, 16>}, {transform_indices = @transform_1, window_bounds = array<i64: 16, 32>}, {transform_indices = @transform_2, window_bounds = array<i64: 1, 32>}, {transform_indices = @transform_3, window_bounds = array<i64: 16, 32>}]} {
    %c0 = arith.constant 0 : index
    %c0_0 = arith.constant 0 : index
    %0 = vector.load %arg2[%c0, %c0_0] : memref<16x16xf32, #tpu.memory_space<vmem>>, vector<16x16xf32>
    %c0_1 = arith.constant 0 : index
    %c0_2 = arith.constant 0 : index
    %1 = vector.load %arg3[%c0_1, %c0_2] : memref<16x32xf32, #tpu.memory_space<vmem>>, vector<16x32xf32>
    %cst = arith.constant dense<0.000000e+00> : vector<16x32xf32>
    %2 = tpu.matmul %0, %1, %cst {dimension_numbers = #tpu.dot_dimension_numbers<[1], [0], [0], [1], [0, 0, 1, 1], [], []>} : vector<16x16xf32>, vector<16x32xf32>, vector<16x32xf32> -> vector<16x32xf32>
    %c0_3 = arith.constant 0 : index
    %c0_4 = arith.constant 0 : index
    %3 = vector.load %arg4[%c0_3, %c0_4] : memref<1x32xf32, #tpu.memory_space<vmem>>, vector<1x32xf32>
    %4 = vector.broadcast %3 : vector<1x32xf32> to vector<16x32xf32>
    %5 = arith.addf %2, %4 : vector<16x32xf32>
    %c0_5 = arith.constant 0 : index
    %c0_6 = arith.constant 0 : index
    %6 = vector.load %arg5[%c0_5, %c0_6] : memref<16x32xf32, #tpu.memory_space<vmem>>, vector<16x32xf32>
    tpu.vector_store %arg5[%c0_5, %c0_6], %5 {strides = array<i32>} : memref<16x32xf32, #tpu.memory_space<vmem>>, vector<16x32xf32>,
    return
  }
  func.func @transform_0(%arg0: i32, %arg1: i32) -> (i32, i32) {
    %c0_i32 = arith.constant 0 : i32
    %c0_i32_0 = arith.constant 0 : i32
    return %arg0, %c0_i32 : i32, i32
  }
  func.func @transform_1(%arg0: i32, %arg1: i32) -> (i32, i32) {
    %c0_i32 = arith.constant 0 : i32
    %c0_i32_0 = arith.constant 0 : i32
    return %c0_i32, %arg1 : i32, i32
  }
  func.func @transform_2(%arg0: i32, %arg1: i32) -> (i32, i32) {
    %c0_i32 = arith.constant 0 : i32
    %c0_i32_0 = arith.constant 0 : i32
    return %c0_i32, %arg1 : i32, i32
  }
  func.func @transform_3(%arg0: i32, %arg1: i32) -> (i32, i32) {
    %c0_i32 = arith.constant 0 : i32
    return %arg0, %arg1 : i32, i32
  }
}

</mosaic_0001>

<llo_original>
// kernel: tpu_custom_call.1
$region0: #{tpu_custom_call.1}
  #allocation0 [shape = 'u32[]', space=smem, size = 0x4, offset = 0x4, fixed_abs, tag = 'smem constant byte address 0x4 - core index']
  #allocation1 [shape = 'u32[144,128]{1,0:T(1,128)}', space=vmem, size = 0x12000, scoped, tag = 'internal scratch']
  %s0 = inlined_call_operand.hbm [shape: f32[16,16], index: 0, kind: input, shape index: {}]
  %s1 = inlined_call_operand.hbm [shape: f32[16,32], index: 1, kind: input, shape index: {}]
  %s2 = inlined_call_operand.vmem [shape: f32[1,32], index: 2, kind: input, shape index: {}]
  %s3 = inlined_call_operand.hbm [shape: f32[16,32], index: 3, kind: output, shape index: {}]
  %s4 = sld [smem:[#allocation0]]
  $region30: #{tpu_custom_call.1} parent=0
    _
  %s6 = ssub.s32 1, %s4
  %s7 = scalar_select 0, %s6, %s4
  $region1: #{tpu_custom_call.1} parent=0
    #allocation2 [shape = 'u8[8192]{0}', space=vmem, size = 0x2000, scoped, tag = 'input window, operand 0, single buffered']
    #allocation3 [shape = 's32[1]{0}', space=sflag, size = 0x4, scoped, tag = 'scoped memory for tpu_custom_call.1']
    #allocation4 [shape = 's32[1]{0}', space=sflag, size = 0x4, scoped, tag = 'scoped memory for tpu_custom_call.1']
    #allocation5 [shape = 'u8[8192]{0}', space=vmem, size = 0x2000, scoped, tag = 'input window, operand 1, single buffered']
    #allocation6 [shape = 's32[1]{0}', space=sflag, size = 0x4, scoped, tag = 'scoped memory for tpu_custom_call.1']
    #allocation7 [shape = 'u8[8192]{0}', space=vmem, size = 0x2000, scoped, tag = 'output window, operand 0, single buffered']
    %8 = vsyncpa [#allocation3], 0
    %9 = vsyncpa [#allocation6], 0
    %10 = vsyncpa [#allocation4], 0
    // Predicated region
    $region2: #{tpu_custom_call.1} parent=1 // pred_check
      _
    $region3: #{tpu_custom_call.1} parent=1 // pred_check_branch
      %12 = sbr.rel (0) target = $region5
    $region4: #{tpu_custom_call.1} parent=1 // pred_region
      %s14 = ssub.s32 256, 256
      %15 = vsyncadd [#allocation3], %s14
      %s16 = sshll.u32 [#allocation2], 4
      %s17 = int_to_ptr.vmem [resolvable:$true] %s16
      %22 = dma.hbm_to_vmem [thread:$0]  %s0, 256, %s17, [#allocation3], 128, 128, 8
    $region5: #{tpu_custom_call.1} parent=1 // pred_fallthru
      _
    // Predicated region
    $region6: #{tpu_custom_call.1} parent=1 // pred_check
      _
    $region7: #{tpu_custom_call.1} parent=1 // pred_check_branch
      %24 = sbr.rel (0) target = $region9
    $region8: #{tpu_custom_call.1} parent=1 // pred_region
      %s26 = ssub.s32 256, 256
      %27 = vsyncadd [#allocation6], %s26
      %s28 = sshll.u32 [#allocation5], 4
      %s29 = int_to_ptr.vmem [resolvable:$true] %s28
      %34 = dma.hbm_to_vmem [thread:$0]  %s1, 256, %s29, [#allocation6], 128, 128, 8
    $region9: #{tpu_custom_call.1} parent=1 // pred_fallthru
      _
    // Predicated region
    $region10: #{tpu_custom_call.1} parent=1 // pred_check
      _
    $region11: #{tpu_custom_call.1} parent=1 // pred_check_branch
      %36 = sbr.rel (0) target = $region13
    $region12: #{tpu_custom_call.1} parent=1 // pred_region
      _
    $region13: #{tpu_custom_call.1} parent=1 // pred_fallthru
      _
    // Predicated region
    $region14: #{tpu_custom_call.1} parent=1 // pred_check
      _
    $region15: #{tpu_custom_call.1} parent=1 // pred_check_branch
      %38 = sbr.rel (0) target = $region17
    $region16: #{tpu_custom_call.1} parent=1 // pred_region
      %39 = dma.done [#allocation3], 256
    $region17: #{tpu_custom_call.1} parent=1 // pred_fallthru
      _
    // Predicated region
    $region18: #{tpu_custom_call.1} parent=1 // pred_check
      _
    $region19: #{tpu_custom_call.1} parent=1 // pred_check_branch
      %41 = sbr.rel (0) target = $region21
    $region20: #{tpu_custom_call.1} parent=1 // pred_region
      %42 = dma.done [#allocation6], 256
    $region21: #{tpu_custom_call.1} parent=1 // pred_fallthru
      _
    %v43 = vld [vmem:[#allocation2] sm:$0xff]
    %v44 = vld [vmem:[#allocation2 + $0x8] sm:$0xff]
    %v45 = vld [vmem:[#allocation5] sm:$0xff]
    %v46 = vld [vmem:[#allocation5 + $0x8] sm:$0xff]
    %v47 = vld [vmem:[%s2] sm:$0x1]
    %v49 = vlaneseq
    %v50 = vshrl.u32 %v49, 7
    %v51 = vsub.s32 0, %v50
    %v52 = vrot.slane %v47, %v51
    %vm54 = vcmask 130048
    %v56 = vsel %vm54, %v43, 0
    %v59 = vsel %vm54, %v44, 0
    %61 = vmatprep.subr.mxu0 0.0
    %62 = vmatpush1.msra.mxu0 0.0
    %63 = vmatprep.subr.mxu0 0.0
    %64 = vmatpush1.msra.mxu0 0.0
    %65 = vmatprep.subr.mxu0 0.0
    %66 = vmatpush1.msra.mxu0 0.0
    %67 = vmatprep.subr.mxu0 0.0
    %68 = vmatpush1.msra.mxu0 0.0
    %69 = vmatprep.subr.mxu0 0.0
    %70 = vmatpush1.msra.mxu0 0.0
    %71 = vmatprep.subr.mxu0 0.0
    %72 = vmatpush1.msra.mxu0 0.0
    %73 = vmatprep.subr.mxu0 0.0
    %74 = vmatpush1.msra.mxu0 0.0
    %75 = vmatprep.subr.mxu0 0.0
    %76 = vmatpush1.msra.mxu0 0.0
    %77 = vmatprep.subr.mxu0 0.0
    %78 = vmatpush1.msra.mxu0 0.0
    %79 = vmatprep.subr.mxu0 0.0
    %80 = vmatpush1.msra.mxu0 0.0
    %81 = vmatprep.subr.mxu0 0.0
    %82 = vmatpush1.msra.mxu0 0.0
    %83 = vmatprep.subr.mxu0 0.0
    %84 = vmatpush1.msra.mxu0 0.0
    %85 = vmatprep.subr.mxu0 0.0
    %86 = vmatpush1.msra.mxu0 0.0
    %87 = vmatprep.subr.mxu0 0.0
    %88 = vmatpush1.msra.mxu0 0.0
    %89 = vmatprep.subr.mxu0 0.0
    %90 = vmatpush1.msra.mxu0 %v46
    %91 = vmatprep.subr.mxu0 0.0
    %92 = vmatpush1.msra.mxu0 %v45
    %93 = vmatprep.subr.mxu0 0.0
    %94 = vmatpush2.msra.mxu0 0.0
    %95 = vmatprep.subr.mxu0 0.0
    %96 = vmatpush2.msra.mxu0 0.0
    %97 = vmatprep.subr.mxu0 0.0
    %98 = vmatpush2.msra.mxu0 0.0
    %99 = vmatprep.subr.mxu0 0.0
    %100 = vmatpush2.msra.mxu0 0.0
    %101 = vmatprep.subr.mxu0 0.0
    %102 = vmatpush2.msra.mxu0 0.0
    %103 = vmatprep.subr.mxu0 0.0
    %104 = vmatpush2.msra.mxu0 0.0
    %105 = vmatprep.subr.mxu0 0.0
    %106 = vmatpush2.msra.mxu0 0.0
    %107 = vmatprep.subr.mxu0 0.0
    %108 = vmatpush2.msra.mxu0 0.0
    %109 = vmatprep.subr.mxu0 0.0
    %110 = vmatpush2.msra.mxu0 0.0
    %111 = vmatprep.subr.mxu0 0.0
    %112 = vmatpush2.msra.mxu0 0.0
    %113 = vmatprep.subr.mxu0 0.0
    %114 = vmatpush2.msra.mxu0 0.0
    %115 = vmatprep.subr.mxu0 0.0
    %116 = vmatpush2.msra.mxu0 0.0
    %117 = vmatprep.subr.mxu0 0.0
    %118 = vmatpush2.msra.mxu0 0.0
    %119 = vmatprep.subr.mxu0 0.0
    %120 = vmatpush2.msra.mxu0 0.0
    %121 = vmatprep.subr.mxu0 0.0
    %122 = vmatpush2.msra.mxu0 0.0
    %123 = vmatprep.subr.mxu0 0.0
    %124 = vmatpush2.msra.mxu0 0.0
    %125 = vmatprep.mubr.f32.mxu0 0.0
    %126 = vmatmul.mubr.f32.gmra.mxu0 %v56
    %v127 = vpop.f32.mrf.mxu0
    %v128 = vadd.f32 %v52, %v127
    %v129 = vpop.f32.mrf.mxu0
    %130 = vmatprep.mubr.f32.mxu0 0.0
    %131 = vmatmul.mubr.f32.gmra.mxu0 %v59
    %v132 = vpop.f32.mrf.mxu0
    %v133 = vadd.f32 %v52, %v132
    %v134 = vpop.f32.mrf.mxu0
    %135 = vdwg.mxu0
    %vm136 = vcmask 261120
    %137 = vst.msk [vmem:[#allocation7] sm:$0xff] %vm136, %v128
    %138 = vst.msk [vmem:[#allocation7 + $0x8] sm:$0xff] %vm136, %v133
    // Predicated region
    $region22: #{tpu_custom_call.1} parent=1 // pred_check
      _
    $region23: #{tpu_custom_call.1} parent=1 // pred_check_branch
      %140 = sbr.rel (0) target = $region25
    $region24: #{tpu_custom_call.1} parent=1 // pred_region
      %s142 = ssub.s32 256, 256
      %143 = vsyncadd [#allocation4], %s142
      %s144 = sshll.u32 [#allocation7], 4
      %s145 = int_to_ptr.vmem [resolvable:$true] %s144
      %150 = dma.vmem_to_hbm [thread:$0]  %s145, 256, %s3, [#allocation4], 128, 128, 8
    $region25: #{tpu_custom_call.1} parent=1 // pred_fallthru
      _
    // Predicated region
    $region26: #{tpu_custom_call.1} parent=1 // pred_check
      _
    $region27: #{tpu_custom_call.1} parent=1 // pred_check_branch
      %152 = sbr.rel (0) target = $region29
    $region28: #{tpu_custom_call.1} parent=1 // pred_region
      %153 = dma.done [#allocation4], 256
    $region29: #{tpu_custom_call.1} parent=1 // pred_fallthru
      _
    %154 = vsyncpa [#allocation3], 1
    %155 = vsyncpa [#allocation6], 1
    %156 = vsyncpa [#allocation4], 1

</llo_original>
